<compile_context>
chip_gen: v6e
topology: v6e:2x2x1
jax: 0.10.0
libtpu: 0.0.40
codegen_flags: <defaults>
</compile_context>

<pallas_src>
import functools

import jax
import jax.numpy as jnp
from jax.experimental import pallas as pl
from jax.experimental.pallas import tpu as pltpu


def _ls_cond_prior_kernel(x_ref, w1_ref, bn_ref, wh_ref, bh_ref, out_ref,
                          *, z_dim: int):
    # ---- Linear (no bias): [B, D] @ [D, H] -> [B, H]  (MXU, f32 accumulate) -
    h = jnp.dot(x_ref[...], w1_ref[...], preferred_element_type=jnp.float32)

    # ---- BatchNorm1d, training mode: one-pass batch stats (biased var) ------
    inv_n = 1.0 / h.shape[0]
    s1 = jnp.sum(h, axis=0, keepdims=True)           # XLU reduce
    s2 = jnp.sum(h * h, axis=0, keepdims=True)       # XLU reduce (independent)
    mean = s1 * inv_n
    var = jnp.maximum(s2 * inv_n - mean * mean, 0.0)
    gamma = bn_ref[0:1, :]
    beta = bn_ref[1:2, :]
    scale = gamma * jax.lax.rsqrt(var + 1e-5)        # EUP rsqrt
    h = (h - mean) * scale + beta

    # ---- ReLU ----------------------------------------------------------------
    h = jnp.maximum(h, 0.0)

    # ---- Fused heads: [B, H] @ [H, P] + [1, P]   (loc || scale-logits || pad)
    y = jnp.dot(h.astype(wh_ref.dtype), wh_ref[...],
                preferred_element_type=jnp.float32) + bh_ref[...]

    # ---- Softplus on the scale half only (lane-mask select, no slicing) ------
    # numerically stable: softplus(y) = max(y,0) + log1p(exp(-|y|))
    sp = jnp.maximum(y, 0.0) + jnp.log1p(jnp.exp(-jnp.abs(y))) + 1e-7
    col = jax.lax.broadcasted_iota(jnp.int32, y.shape, 1)
    is_scale = (col >= z_dim) & (col < 2 * z_dim)
    out_ref[...] = jnp.where(is_scale, sp, y)


def ls_cond_prior_forward(x, w1_t, gamma, beta, wloc_t, bloc, wscale_t, bscale,
                          *, use_bf16_matmul: bool = False):
    """x: [B, D] float32.  Returns (z_loc, z_scale), each [B, Z] float32.

    Weights are pre-transposed: w1_t [D, H], wloc_t/wscale_t [H, Z].
    Set `use_bf16_matmul=True` on v6e/v7x to feed the MXU bf16 operands
    (f32 accumulation; BN / softplus stay f32).
    """
    B, D = x.shape
    H = w1_t.shape[1]
    Z = wloc_t.shape[1]

    # Host-side parameter packing (fewer tiny DMAs) + lane padding of the fused
    # head so the output store is an unmasked, lane-dense vst.
    n_out = 2 * Z
    n_pad = max(128, ((n_out + 127) // 128) * 128)

    w_head = jnp.concatenate([wloc_t, wscale_t], axis=1)            # [H, 2Z]
    b_head = jnp.concatenate([bloc, bscale], axis=1)                # [1, 2Z]
    if n_pad != n_out:
        w_head = jnp.pad(w_head, ((0, 0), (0, n_pad - n_out)))      # [H, P]
        b_head = jnp.pad(b_head, ((0, 0), (0, n_pad - n_out)))      # [1, P]
    bn_gb = jnp.concatenate([gamma, beta], axis=0)                  # [2, H]

    if use_bf16_matmul:
        x_in = x.astype(jnp.bfloat16)
        w1_in = w1_t.astype(jnp.bfloat16)
        wh_in = w_head.astype(jnp.bfloat16)
    else:
        x_in, w1_in, wh_in = x, w1_t, w_head

    flops = 2 * B * D * H + 2 * B * H * n_pad
    transcendentals = 2 * B * n_pad + H               # exp + log1p, rsqrt
    bytes_accessed = (
        sum(int(a.size) * a.dtype.itemsize
            for a in (x_in, w1_in, bn_gb, wh_in, b_head))
        + B * n_pad * 4)

    vmem = pl.BlockSpec(memory_space=pltpu.MemorySpace.VMEM)
    out = pl.pallas_call(
        functools.partial(_ls_cond_prior_kernel, z_dim=Z),
        out_shape=jax.ShapeDtypeStruct((B, n_pad), jnp.float32),
        in_specs=[vmem] * 5,
        out_specs=vmem,
        cost_estimate=pl.CostEstimate(flops=flops,
                                      transcendentals=transcendentals,
                                      bytes_accessed=bytes_accessed),
    )(x_in, w1_in, bn_gb, wh_in, b_head)

    return out[:, :Z], out[:, Z:2 * Z]


def xavier_uniform(key, fan_out, fan_in):
    """torch.nn.init.xavier_uniform_ for a [out, in] weight; returned as [in, out]."""
    bound = (6.0 / (fan_in + fan_out)) ** 0.5
    w = jax.random.uniform(key, (fan_out, fan_in), jnp.float32, -bound, bound)
    return w.T  # pre-transposed to [in, out] so the kernel does x @ W


def reference_forward(x, w1_t, gamma, beta, wloc_t, bloc, wscale_t, bscale):
    h = x @ w1_t
    mean = jnp.mean(h, axis=0, keepdims=True)
    var = jnp.mean((h - mean) ** 2, axis=0, keepdims=True)
    h = (h - mean) / jnp.sqrt(var + 1e-5) * gamma + beta
    h = jnp.maximum(h, 0.0)
    loc = h @ wloc_t + bloc
    scale = jax.nn.softplus(h @ wscale_t + bscale) + 1e-7
    return loc, scale


if __name__ == "__main__":
    # Small shapes consistent with the module: hidden_dim defaults to z_dim.
    B, HYPER_PRIOR_DIM, Z_DIM = 8, 16, 32
    HIDDEN_DIM = Z_DIM

    key = jax.random.PRNGKey(0)
    k_x, k_w1, k_wloc, k_wscale = jax.random.split(key, 4)

    # Deterministic parameter init matching the module's __init__.
    w1_t = xavier_uniform(k_w1, HIDDEN_DIM, HYPER_PRIOR_DIM)        # [D, H]
    gamma = jnp.ones((1, HIDDEN_DIM), jnp.float32)                  # BN weight
    beta = jnp.zeros((1, HIDDEN_DIM), jnp.float32)                  # BN bias
    wloc_t = xavier_uniform(k_wloc, Z_DIM, HIDDEN_DIM)              # [H, Z]
    bloc = jnp.zeros((1, Z_DIM), jnp.float32)
    wscale_t = xavier_uniform(k_wscale, Z_DIM, HIDDEN_DIM)          # [H, Z]
    bscale = jnp.zeros((1, Z_DIM), jnp.float32)

    x = jax.random.normal(k_x, (B, HYPER_PRIOR_DIM), jnp.float32)

    # f32 path (matches PyTorch train-mode numerics).
    z_loc, z_scale = ls_cond_prior_forward(
        x, w1_t, gamma, beta, wloc_t, bloc, wscale_t, bscale)
    jax.block_until_ready((z_loc, z_scale))

    ref_loc, ref_scale = reference_forward(
        x, w1_t, gamma, beta, wloc_t, bloc, wscale_t, bscale)
    assert z_loc.shape == (B, Z_DIM) and z_scale.shape == (B, Z_DIM)
    assert jnp.allclose(z_loc, ref_loc, atol=1e-5, rtol=1e-5)
    assert jnp.allclose(z_scale, ref_scale, atol=1e-5, rtol=1e-5)
    assert bool(jnp.all(z_scale > 0.0))

    # TODO(synk): torch.distributions.Normal has no Pallas equivalent; the
    # kernel returns (loc, scale) which fully parameterize the prior.
    print("KERNEL_OK")
</pallas_src>

<mosaic_0001>
module attributes {stable_mosaic.version = 11 : i64} {
  func.func @_ls_cond_prior_kernel(%arg0: memref<8x16xf32, #tpu.memory_space<vmem>>, %arg1: memref<16x32xf32, #tpu.memory_space<vmem>>, %arg2: memref<2x32xf32, #tpu.memory_space<vmem>>, %arg3: memref<32x128xf32, #tpu.memory_space<vmem>>, %arg4: memref<1x128xf32, #tpu.memory_space<vmem>>, %arg5: memref<8x128xf32, #tpu.memory_space<vmem>>) attributes {dimension_semantics = [], scalar_prefetch = 0 : i64, scratch_operands = 0 : i64, tpu.core_type = #tpu.core_type<tc>} {
    %c0 = arith.constant 0 : index
    %c0_0 = arith.constant 0 : index
    %0 = vector.load %arg0[%c0, %c0_0] : memref<8x16xf32, #tpu.memory_space<vmem>>, vector<8x16xf32>
    %c0_1 = arith.constant 0 : index
    %c0_2 = arith.constant 0 : index
    %1 = vector.load %arg1[%c0_1, %c0_2] : memref<16x32xf32, #tpu.memory_space<vmem>>, vector<16x32xf32>
    %cst = arith.constant dense<0.000000e+00> : vector<8x32xf32>
    %2 = tpu.matmul %0, %1, %cst {dimension_numbers = #tpu.dot_dimension_numbers<[1], [0], [0], [1], [0, 0, 1, 1], [], []>} : vector<8x16xf32>, vector<16x32xf32>, vector<8x32xf32> -> vector<8x32xf32>
    %cst_3 = arith.constant dense<0.000000e+00> : vector<32xf32>
    %3 = vector.multi_reduction <add>, %2, %cst_3 [0] : vector<8x32xf32> to vector<32xf32>
    %4 = vector.shape_cast %3 : vector<32xf32> to vector<1x32xf32>
    %5 = arith.mulf %2, %2 : vector<8x32xf32>
    %cst_4 = arith.constant dense<0.000000e+00> : vector<32xf32>
    %6 = vector.multi_reduction <add>, %5, %cst_4 [0] : vector<8x32xf32> to vector<32xf32>
    %7 = vector.shape_cast %6 : vector<32xf32> to vector<1x32xf32>
    %cst_5 = arith.constant 1.250000e-01 : f32
    %8 = vector.broadcast %cst_5 : f32 to vector<1x32xf32>
    %9 = arith.mulf %4, %8 : vector<1x32xf32>
    %cst_6 = arith.constant 1.250000e-01 : f32
    %10 = vector.broadcast %cst_6 : f32 to vector<1x32xf32>
    %11 = arith.mulf %7, %10 : vector<1x32xf32>
    %12 = arith.mulf %9, %9 : vector<1x32xf32>
    %13 = arith.subf %11, %12 : vector<1x32xf32>
    %cst_7 = arith.constant 0.000000e+00 : f32
    %14 = vector.broadcast %cst_7 : f32 to vector<1x32xf32>
    %15 = arith.maximumf %13, %14 : vector<1x32xf32>
    %c0_8 = arith.constant 0 : index
    %c0_9 = arith.constant 0 : index
    %16 = vector.load %arg2[%c0_8, %c0_9] : memref<2x32xf32, #tpu.memory_space<vmem>>, vector<1x32xf32>
    %c1 = arith.constant 1 : index
    %c0_10 = arith.constant 0 : index
    %17 = vector.load %arg2[%c1, %c0_10] : memref<2x32xf32, #tpu.memory_space<vmem>>, vector<1x32xf32>
    %cst_11 = arith.constant 9.99999974E-6 : f32
    %18 = vector.broadcast %cst_11 : f32 to vector<1x32xf32>
    %19 = arith.addf %15, %18 : vector<1x32xf32>
    %20 = math.rsqrt %19 : vector<1x32xf32>
    %21 = arith.mulf %16, %20 : vector<1x32xf32>
    %22 = vector.broadcast %9 : vector<1x32xf32> to vector<8x32xf32>
    %23 = arith.subf %2, %22 : vector<8x32xf32>
    %24 = vector.broadcast %21 : vector<1x32xf32> to vector<8x32xf32>
    %25 = arith.mulf %23, %24 : vector<8x32xf32>
    %26 = vector.broadcast %17 : vector<1x32xf32> to vector<8x32xf32>
    %27 = arith.addf %25, %26 : vector<8x32xf32>
    %cst_12 = arith.constant 0.000000e+00 : f32
    %28 = vector.broadcast %cst_12 : f32 to vector<8x32xf32>
    %29 = arith.maximumf %27, %28 : vector<8x32xf32>
    %c0_13 = arith.constant 0 : index
    %c0_14 = arith.constant 0 : index
    %30 = vector.load %arg3[%c0_13, %c0_14] : memref<32x128xf32, #tpu.memory_space<vmem>>, vector<32x128xf32>
    %cst_15 = arith.constant dense<0.000000e+00> : vector<8x128xf32>
    %31 = tpu.matmul %29, %30, %cst_15 {dimension_numbers = #tpu.dot_dimension_numbers<[1], [0], [0], [1], [0, 0, 1, 1], [], []>} : vector<8x32xf32>, vector<32x128xf32>, vector<8x128xf32> -> vector<8x128xf32>
    %c0_16 = arith.constant 0 : index
    %c0_17 = arith.constant 0 : index
    %32 = vector.load %arg4[%c0_16, %c0_17] : memref<1x128xf32, #tpu.memory_space<vmem>>, vector<1x128xf32>
    %33 = vector.broadcast %32 : vector<1x128xf32> to vector<8x128xf32>
    %34 = arith.addf %31, %33 : vector<8x128xf32>
    %cst_18 = arith.constant 0.000000e+00 : f32
    %35 = vector.broadcast %cst_18 : f32 to vector<8x128xf32>
    %36 = arith.maximumf %34, %35 : vector<8x128xf32>
    %37 = math.absf %34 : vector<8x128xf32>
    %cst_19 = arith.constant 0.000000e+00 : f32
    %38 = vector.broadcast %cst_19 : f32 to vector<8x128xf32>
    %39 = arith.subf %38, %37 : vector<8x128xf32>
    %40 = math.exp %39 : vector<8x128xf32>
    %41 = math.log1p %40 : vector<8x128xf32>
    %42 = arith.addf %36, %41 : vector<8x128xf32>
    %cst_20 = arith.constant 1.000000e-07 : f32
    %43 = vector.broadcast %cst_20 : f32 to vector<8x128xf32>
    %44 = arith.addf %42, %43 : vector<8x128xf32>
    %45 = tpu.iota {dimensions = array<i32: 1>} : vector<8x128xi32>
    %c32_i32 = arith.constant 32 : i32
    %46 = vector.broadcast %c32_i32 : i32 to vector<8x128xi32>
    %47 = arith.cmpi sge, %45, %46 : vector<8x128xi32>
    %c64_i32 = arith.constant 64 : i32
    %48 = vector.broadcast %c64_i32 : i32 to vector<8x128xi32>
    %49 = arith.cmpi slt, %45, %48 : vector<8x128xi32>
    %50 = arith.andi %47, %49 : vector<8x128xi1>
    %51 = arith.select %50, %44, %34 : vector<8x128xi1>, vector<8x128xf32>
    %c0_21 = arith.constant 0 : index
    %c0_22 = arith.constant 0 : index
    %52 = vector.load %arg5[%c0_21, %c0_22] : memref<8x128xf32, #tpu.memory_space<vmem>>, vector<8x128xf32>
    tpu.vector_store %arg5[%c0_21, %c0_22], %51 {strides = array<i32>} : memref<8x128xf32, #tpu.memory_space<vmem>>, vector<8x128xf32>,
    return
  }
}

</mosaic_0001>

<llo_original>
// kernel: tpu_custom_call.1
$region0: #{tpu_custom_call.1}
  #allocation0 [shape = 'u32[]', space=smem, size = 0x4, offset = 0x4, fixed_abs, tag = 'smem constant byte address 0x4 - core index']
  #allocation1 [shape = 'u32[144,128]{1,0:T(1,128)}', space=vmem, size = 0x12000, scoped, tag = 'internal scratch']
  %s0 = inlined_call_operand.hbm [shape: f32[8,16], index: 0, kind: input, shape index: {}]
  %s1 = inlined_call_operand.hbm [shape: f32[16,32], index: 1, kind: input, shape index: {}]
  %s2 = inlined_call_operand.vmem [shape: f32[2,32], index: 2, kind: input, shape index: {}]
  %s3 = inlined_call_operand.hbm [shape: f32[32,128], index: 3, kind: input, shape index: {}]
  %s4 = inlined_call_operand.vmem [shape: f32[1,128], index: 4, kind: input, shape index: {}]
  %s5 = inlined_call_operand.hbm [shape: f32[8,128], index: 5, kind: output, shape index: {}]
  %s6 = sld [smem:[#allocation0]]
  $region42: #{tpu_custom_call.1} parent=0
    _
  %s8 = ssub.s32 1, %s6
  %s9 = scalar_select 0, %s8, %s6
  $region1: #{tpu_custom_call.1} parent=0
    #allocation2 [shape = 'u8[4096]{0}', space=vmem, size = 0x1000, scoped, tag = 'input window, operand 0, single buffered']
    #allocation3 [shape = 's32[1]{0}', space=sflag, size = 0x4, scoped, tag = 'scoped memory for tpu_custom_call.1']
    #allocation4 [shape = 's32[1]{0}', space=sflag, size = 0x4, scoped, tag = 'scoped memory for tpu_custom_call.1']
    #allocation5 [shape = 'u8[8192]{0}', space=vmem, size = 0x2000, scoped, tag = 'input window, operand 1, single buffered']
    #allocation6 [shape = 's32[1]{0}', space=sflag, size = 0x4, scoped, tag = 'scoped memory for tpu_custom_call.1']
    #allocation7 [shape = 'u8[16384]{0}', space=vmem, size = 0x4000, scoped, tag = 'input window, operand 3, single buffered']
    #allocation8 [shape = 'u8[4096]{0}', space=vmem, size = 0x1000, scoped, tag = 'output window, operand 0, single buffered']
    %10 = vsyncpa [#allocation3], 0
    %11 = vsyncpa [#allocation6], 0
    %12 = vsyncpa [#allocation4], 0
    // Predicated region
    $region2: #{tpu_custom_call.1} parent=1 // pred_check
      _
    $region3: #{tpu_custom_call.1} parent=1 // pred_check_branch
      %14 = sbr.rel (0) target = $region5
    $region4: #{tpu_custom_call.1} parent=1 // pred_region
      %s16 = ssub.s32 128, 128
      %17 = vsyncadd [#allocation3], %s16
      %s19 = sshll.u32 [#allocation2], 4
      %s20 = int_to_ptr.vmem [resolvable:$true] %s19
      %22 = dma.hbm_to_vmem [thread:$0]  %s0, 128, %s20, [#allocation3]
    $region5: #{tpu_custom_call.1} parent=1 // pred_fallthru
      _
    // Predicated region
    $region6: #{tpu_custom_call.1} parent=1 // pred_check
      _
    $region7: #{tpu_custom_call.1} parent=1 // pred_check_branch
      %24 = sbr.rel (0) target = $region9
    $region8: #{tpu_custom_call.1} parent=1 // pred_region
      %s26 = ssub.s32 256, 256
      %27 = vsyncadd [#allocation6], %s26
      %s28 = sshll.u32 [#allocation5], 4
      %s29 = int_to_ptr.vmem [resolvable:$true] %s28
      %34 = dma.hbm_to_vmem [thread:$0]  %s1, 256, %s29, [#allocation6], 128, 128, 8
    $region9: #{tpu_custom_call.1} parent=1 // pred_fallthru
      _
    // Predicated region
    $region10: #{tpu_custom_call.1} parent=1 // pred_check
      _
    $region11: #{tpu_custom_call.1} parent=1 // pred_check_branch
      %36 = sbr.rel (0) target = $region13
    $region12: #{tpu_custom_call.1} parent=1 // pred_region
      _
    $region13: #{tpu_custom_call.1} parent=1 // pred_fallthru
      _
    // Predicated region
    $region14: #{tpu_custom_call.1} parent=1 // pred_check
      _
    $region15: #{tpu_custom_call.1} parent=1 // pred_check_branch
      %38 = sbr.rel (0) target = $region17
    $region16: #{tpu_custom_call.1} parent=1 // pred_region
      %s40 = ssub.s32 512, 512
      %41 = vsyncadd [#allocation6], %s40
      %s42 = sshll.u32 [#allocation7], 4
      %s43 = int_to_ptr.vmem [resolvable:$true] %s42
      %48 = dma.hbm_to_vmem [thread:$0]  %s3, 512, %s43, [#allocation6], 128, 128, 8
    $region17: #{tpu_custom_call.1} parent=1 // pred_fallthru
      _
    // Predicated region
    $region18: #{tpu_custom_call.1} parent=1 // pred_check
      _
    $region19: #{tpu_custom_call.1} parent=1 // pred_check_branch
      %50 = sbr.rel (0) target = $region21
    $region20: #{tpu_custom_call.1} parent=1 // pred_region
      _
    $region21: #{tpu_custom_call.1} parent=1 // pred_fallthru
      _
    // Predicated region
    $region22: #{tpu_custom_call.1} parent=1 // pred_check
      _
    $region23: #{tpu_custom_call.1} parent=1 // pred_check_branch
      %52 = sbr.rel (0) target = $region25
    $region24: #{tpu_custom_call.1} parent=1 // pred_region
      %53 = dma.done [#allocation3], 128
    $region25: #{tpu_custom_call.1} parent=1 // pred_fallthru
      _
    // Predicated region
    $region26: #{tpu_custom_call.1} parent=1 // pred_check
      _
    $region27: #{tpu_custom_call.1} parent=1 // pred_check_branch
      %55 = sbr.rel (0) target = $region29
    $region28: #{tpu_custom_call.1} parent=1 // pred_region
      %56 = dma.done [#allocation6], 256
    $region29: #{tpu_custom_call.1} parent=1 // pred_fallthru
      _
    // Predicated region
    $region30: #{tpu_custom_call.1} parent=1 // pred_check
      _
    $region31: #{tpu_custom_call.1} parent=1 // pred_check_branch
      %58 = sbr.rel (0) target = $region33
    $region32: #{tpu_custom_call.1} parent=1 // pred_region
      %59 = dma.done [#allocation6], 512
    $region33: #{tpu_custom_call.1} parent=1 // pred_fallthru
      _
    %v60 = vld [vmem:[#allocation2] sm:$0xff]
    %v61 = vld [vmem:[#allocation5] sm:$0xff]
    %v62 = vld [vmem:[#allocation5 + $0x8] sm:$0xff]
    %vm63 = vcmask 130048
    %v65 = vsel %vm63, %v60, 0
    %67 = vmatprep.subr.mxu0 0.0
    %68 = vmatpush1.msra.mxu0 0.0
    %69 = vmatprep.subr.mxu0 0.0
    %70 = vmatpush1.msra.mxu0 0.0
    %71 = vmatprep.subr.mxu0 0.0
    %72 = vmatpush1.msra.mxu0 0.0
    %73 = vmatprep.subr.mxu0 0.0
    %74 = vmatpush1.msra.mxu0 0.0
    %75 = vmatprep.subr.mxu0 0.0
    %76 = vmatpush1.msra.mxu0 0.0
    %77 = vmatprep.subr.mxu0 0.0
    %78 = vmatpush1.msra.mxu0 0.0
    %79 = vmatprep.subr.mxu0 0.0
    %80 = vmatpush1.msra.mxu0 0.0
    %81 = vmatprep.subr.mxu0 0.0
    %82 = vmatpush1.msra.mxu0 0.0
    %83 = vmatprep.subr.mxu0 0.0
    %84 = vmatpush1.msra.mxu0 0.0
    %85 = vmatprep.subr.mxu0 0.0
    %86 = vmatpush1.msra.mxu0 0.0
    %87 = vmatprep.subr.mxu0 0.0
    %88 = vmatpush1.msra.mxu0 0.0
    %89 = vmatprep.subr.mxu0 0.0
    %90 = vmatpush1.msra.mxu0 0.0
    %91 = vmatprep.subr.mxu0 0.0
    %92 = vmatpush1.msra.mxu0 0.0
    %93 = vmatprep.subr.mxu0 0.0
    %94 = vmatpush1.msra.mxu0 0.0
    %95 = vmatprep.subr.mxu0 0.0
    %96 = vmatpush1.msra.mxu0 %v62
    %97 = vmatprep.subr.mxu0 0.0
    %98 = vmatpush1.msra.mxu0 %v61
    %99 = vmatprep.subr.mxu0 0.0
    %100 = vmatpush2.msra.mxu0 0.0
    %101 = vmatprep.subr.mxu0 0.0
    %102 = vmatpush2.msra.mxu0 0.0
    %103 = vmatprep.subr.mxu0 0.0
    %104 = vmatpush2.msra.mxu0 0.0
    %105 = vmatprep.subr.mxu0 0.0
    %106 = vmatpush2.msra.mxu0 0.0
    %107 = vmatprep.subr.mxu0 0.0
    %108 = vmatpush2.msra.mxu0 0.0
    %109 = vmatprep.subr.mxu0 0.0
    %110 = vmatpush2.msra.mxu0 0.0
    %111 = vmatprep.subr.mxu0 0.0
    %112 = vmatpush2.msra.mxu0 0.0
    %113 = vmatprep.subr.mxu0 0.0
    %114 = vmatpush2.msra.mxu0 0.0
    %115 = vmatprep.subr.mxu0 0.0
    %116 = vmatpush2.msra.mxu0 0.0
    %117 = vmatprep.subr.mxu0 0.0
    %118 = vmatpush2.msra.mxu0 0.0
    %119 = vmatprep.subr.mxu0 0.0
    %120 = vmatpush2.msra.mxu0 0.0
    %121 = vmatprep.subr.mxu0 0.0
    %122 = vmatpush2.msra.mxu0 0.0
    %123 = vmatprep.subr.mxu0 0.0
    %124 = vmatpush2.msra.mxu0 0.0
    %125 = vmatprep.subr.mxu0 0.0
    %126 = vmatpush2.msra.mxu0 0.0
    %127 = vmatprep.subr.mxu0 0.0
    %128 = vmatpush2.msra.mxu0 0.0
    %129 = vmatprep.subr.mxu0 0.0
    %130 = vmatpush2.msra.mxu0 0.0
    %131 = vmatprep.mubr.f32.mxu0 0.0
    %132 = vmatmul.mubr.f32.gmra.mxu0 %v65
    %v133 = vpop.f32.mrf.mxu0
    %v134 = vadd.f32 0.0, %v133
    %v135 = vpop.f32.mrf.mxu0
    %136 = vdwg.mxu0
    %vm137 = vcmask 261120
    %v138 = vsel %vm137, %v134, 0.0
    %v139 = vrot.slane %v138, 4
    %v140 = vadd.f32 %v138, %v139
    %v141 = vrot.slane %v140, 2
    %v142 = vadd.f32 %v140, %v141
    %v143 = vrot.slane %v142, 1
    %v144 = vadd.f32 %v142, %v143
    %v145 = vmul.f32 %v134, %v134
    %v146 = vsel %vm137, %v145, 0.0
    %v147 = vrot.slane %v146, 4
    %v148 = vadd.f32 %v146, %v147
    %v149 = vrot.slane %v148, 2
    %v150 = vadd.f32 %v148, %v149
    %v151 = vrot.slane %v150, 1
    %v152 = vadd.f32 %v150, %v151
    %v153 = vmul.f32 %v144, 0.125
    %v154 = vmul.f32 %v152, 0.125
    %v155 = vmul.f32 %v153, %v153
    %v156 = vsub.f32 %v154, %v155
    %v157 = vmax.f32 %v156, 0.0
    %v158 = vld [vmem:[%s2] sm:$0x1]
    %v159 = vld [vmem:[%s2 + $0x1] sm:$0x1]
    %v160 = vadd.f32 %v157, 1e-05
    %v161 = vrsqrt.pop %v160
    %v162 = vmul.f32 %v158, %v161
    %v163 = vsub.f32 %v134, %v153
    %v164 = vlaneseq
    %v165 = vshrl.u32 %v164, 7
    %v166 = vsub.s32 0, %v165
    %v167 = vrot.slane %v162, %v166
    %v168 = vmul.f32 %v163, %v167
    %v169 = vlaneseq
    %v170 = vshrl.u32 %v169, 7
    %v171 = vsub.s32 0, %v170
    %v172 = vrot.slane %v159, %v171
    %v173 = vadd.f32 %v168, %v172
    %v174 = vmax.f32 %v173, 0.0
    %v175 = vld [vmem:[#allocation7] sm:$0xff]
    %v176 = vld [vmem:[#allocation7 + $0x8] sm:$0xff]
    %v177 = vld [vmem:[#allocation7 + $0x10] sm:$0xff]
    %v178 = vld [vmem:[#allocation7 + $0x18] sm:$0xff]
    %v179 = vld [vmem:[%s4] sm:$0x1]
    %v181 = vlaneseq
    %v182 = vshrl.u32 %v181, 7
    %v183 = vsub.s32 0, %v182
    %v184 = vrot.slane %v179, %v183
    %v187 = vsel %vm137, %v174, 0
    %189 = vmatprep.subr.mxu0 0.0
    %190 = vmatpush1.msra.mxu0 0.0
    %191 = vmatprep.subr.mxu0 0.0
    %192 = vmatpush1.msra.mxu0 0.0
    %193 = vmatprep.subr.mxu0 0.0
    %194 = vmatpush1.msra.mxu0 0.0
    %195 = vmatprep.subr.mxu0 0.0
    %196 = vmatpush1.msra.mxu0 0.0
    %197 = vmatprep.subr.mxu0 0.0
    %198 = vmatpush1.msra.mxu0 0.0
    %199 = vmatprep.subr.mxu0 0.0
    %200 = vmatpush1.msra.mxu0 0.0
    %201 = vmatprep.subr.mxu0 0.0
    %202 = vmatpush1.msra.mxu0 0.0
    %203 = vmatprep.subr.mxu0 0.0
    %204 = vmatpush1.msra.mxu0 0.0
    %205 = vmatprep.subr.mxu0 0.0
    %206 = vmatpush1.msra.mxu0 0.0
    %207 = vmatprep.subr.mxu0 0.0
    %208 = vmatpush1.msra.mxu0 0.0
    %209 = vmatprep.subr.mxu0 0.0
    %210 = vmatpush1.msra.mxu0 0.0
    %211 = vmatprep.subr.mxu0 0.0
    %212 = vmatpush1.msra.mxu0 0.0
    %213 = vmatprep.subr.mxu0 0.0
    %214 = vmatpush1.msra.mxu0 %v178
    %215 = vmatprep.subr.mxu0 0.0
    %216 = vmatpush1.msra.mxu0 %v177
    %217 = vmatprep.subr.mxu0 0.0
    %218 = vmatpush1.msra.mxu0 %v176
    %219 = vmatprep.subr.mxu0 0.0
    %220 = vmatpush1.msra.mxu0 %v175
    %221 = vmatprep.subr.mxu0 0.0
    %222 = vmatpush2.msra.mxu0 0.0
    %223 = vmatprep.subr.mxu0 0.0
    %224 = vmatpush2.msra.mxu0 0.0
    %225 = vmatprep.subr.mxu0 0.0
    %226 = vmatpush2.msra.mxu0 0.0
    %227 = vmatprep.subr.mxu0 0.0
    %228 = vmatpush2.msra.mxu0 0.0
    %229 = vmatprep.subr.mxu0 0.0
    %230 = vmatpush2.msra.mxu0 0.0
    %231 = vmatprep.subr.mxu0 0.0
    %232 = vmatpush2.msra.mxu0 0.0
    %233 = vmatprep.subr.mxu0 0.0
    %234 = vmatpush2.msra.mxu0 0.0
    %235 = vmatprep.subr.mxu0 0.0
    %236 = vmatpush2.msra.mxu0 0.0
    %237 = vmatprep.subr.mxu0 0.0
    %238 = vmatpush2.msra.mxu0 0.0
    %239 = vmatprep.subr.mxu0 0.0
    %240 = vmatpush2.msra.mxu0 0.0
    %241 = vmatprep.subr.mxu0 0.0
    %242 = vmatpush2.msra.mxu0 0.0
    %243 = vmatprep.subr.mxu0 0.0
    %244 = vmatpush2.msra.mxu0 0.0
    %245 = vmatprep.subr.mxu0 0.0
    %246 = vmatpush2.msra.mxu0 0.0
    %247 = vmatprep.subr.mxu0 0.0
    %248 = vmatpush2.msra.mxu0 0.0
    %249 = vmatprep.subr.mxu0 0.0
    %250 = vmatpush2.msra.mxu0 0.0
    %251 = vmatprep.subr.mxu0 0.0
    %252 = vmatpush2.msra.mxu0 0.0
    %253 = vmatprep.mubr.f32.mxu0 0.0
    %254 = vmatmul.mubr.f32.gmra.mxu0 %v187
    %v255 = vpop.f32.mrf.mxu0
    %v256 = vadd.f32 %v184, %v255
    %v257 = vpop.f32.mrf.mxu0
    %258 = vdwg.mxu0
    %v259 = vmax.f32 %v256, 0.0
    %v260 = vand.u32 2147483647, %v256
    %v261 = vsub.f32 0.0, %v260
    %v262 = vmul.f32 %v261, 1.442695
    %v263 = vpow.pop %v262
    %v264 = vadd.f32 %v263, 1.0
    %v265 = vlog2.pop %v264
    %v266 = vmul.f32 %v265, 0.6931472
    %v267 = vmul.f32 -0.5, %v263
    %v268 = vadd.f32 %v267, 1.0
    %v269 = vmul.f32 %v268, %v263
    %v270 = vand.u32 2147483647, %v263
    %vm271 = vcmp.lt.f32.partialorder %v270, 0.0004427343
    %v272 = vsel %vm271, %v269, %v266
    %v273 = vadd.f32 %v259, %v272
    %v274 = vadd.f32 %v273, 1e-07
    %v275 = vlaneseq
    %v276 = vand.u32 %v275, 127
    %vm277 = vcmp.ge.s32.totalorder %v276, 32
    %vm278 = vcmp.lt.s32.totalorder %v276, 64
    %vm279 = vmand %vm277, %vm278
    %v280 = vsel %vm279, %v274, %v256
    %281 = vst [vmem:[#allocation8] sm:$0xff] %v280
    // Predicated region
    $region34: #{tpu_custom_call.1} parent=1 // pred_check
      _
    $region35: #{tpu_custom_call.1} parent=1 // pred_check_branch
      %283 = sbr.rel (0) target = $region37
    $region36: #{tpu_custom_call.1} parent=1 // pred_region
      %s285 = ssub.s32 128, 128
      %286 = vsyncadd [#allocation4], %s285
      %s288 = sshll.u32 [#allocation8], 4
      %s289 = int_to_ptr.vmem [resolvable:$true] %s288
      %291 = dma.vmem_to_hbm [thread:$0]  %s289, 128, %s5, [#allocation4]
    $region37: #{tpu_custom_call.1} parent=1 // pred_fallthru
      _
    // Predicated region
    $region38: #{tpu_custom_call.1} parent=1 // pred_check
      _
    $region39: #{tpu_custom_call.1} parent=1 // pred_check_branch
      %293 = sbr.rel (0) target = $region41
    $region40: #{tpu_custom_call.1} parent=1 // pred_region
      %294 = dma.done [#allocation4], 128
    $region41: #{tpu_custom_call.1} parent=1 // pred_fallthru
      _
    %295 = vsyncpa [#allocation3], 1
    %296 = vsyncpa [#allocation6], 1
    %297 = vsyncpa [#allocation4], 1

</llo_original>
